<compile_context>
chip_gen: v7x
topology: tpu7x:2x2x1
jax: 0.10.0
libtpu: 0.0.40
codegen_flags: <defaults>
</compile_context>

<pallas_src>
from functools import partial

import jax
import jax.numpy as jnp
from jax.experimental import pallas as pl
from jax.experimental.pallas import tpu as pltpu


def _fpn_decoder_kernel(x_ref, w_ref, b_ref, o_ref, *, h_tile, w_in, scale):
    # x_ref : (1, h_tile*W, Cin)            flattened rows of one image tile
    # w_ref : (Cin, scale*Cout)             1x1 conv weight, pre-tiled over width-replication
    # b_ref : (1, scale*Cout)               bias, pre-tiled to match
    # o_ref : (h_tile, scale, W, scale*Cout) == NHWC (h_tile*s, W*s, Cout) rows, row-major
    x = x_ref[0]                                                     # (h_tile*W, Cin)
    z = jnp.dot(x, w_ref[...], preferred_element_type=jnp.float32)   # (h_tile*W, s*Cout)
    z = z + b_ref[...]
    # Split the sublane (M) axis back into (h, w): tile-aligned split, no data movement.
    z = z.reshape(h_tile, w_in, z.shape[-1]).astype(o_ref.dtype)

    # Nearest-neighbor HEIGHT replication: write the same tile into each of the `scale` output
    # rows per input row (static-sliced stores; no extra matmul, no iota/compare).
    for r in range(scale):
        o_ref[:, r, :, :] = z


def _ceil_to(x, m):
    return -(-x // m) * m


def _padded_block_bytes(shape, itemsize):
    """VMEM footprint of a block after Mosaic lane(128)/sublane padding."""
    shape = list(shape)
    if len(shape) >= 2:
        shape[-1] = _ceil_to(shape[-1], 128)
        shape[-2] = _ceil_to(shape[-2], 8 * max(1, 4 // itemsize))
    elif shape:
        shape[-1] = _ceil_to(shape[-1], 128)
    n = 1
    for d in shape:
        n *= d
    return n * itemsize


def _pick_h_tile(H, W, Cin, Cout, s, itemsize, budget_bytes):
    """Largest divisor of H whose per-step (double-buffered) VMEM footprint fits the budget."""
    def step_bytes(ht):
        in_blk = _padded_block_bytes((1, ht * W, Cin), itemsize)
        out_blk = _padded_block_bytes((ht, s, W, s * Cout), itemsize)
        wgt = _padded_block_bytes((Cin, s * Cout), itemsize)
        bia = _padded_block_bytes((1, s * Cout), itemsize)
        # BlockSpec double-buffers input and output blocks; weight/bias are resident.
        return 2 * (in_blk + out_blk) + wgt + bia

    for ht in range(H, 0, -1):
        if H % ht == 0 and step_bytes(ht) <= budget_bytes:
            return ht
    return 1


def fpn_decoder_block_nhwc(x_nhwc, w_oi, bias, scale_factor, *,
                           h_tile=None, vmem_limit_bytes=32 * 1024 * 1024):
    """Fused nearest-upsample(scale_factor) + 1x1 conv, NHWC in / NHWC out.

    x_nhwc : (N, H, W, Cin)
    w_oi   : (Cout, Cin)   -- PyTorch nn.Conv2d weight[:, :, 0, 0]
    bias   : (Cout,)
    returns (N, H*s, W*s, Cout)
    """
    N, H, W, Cin = x_nhwc.shape
    Cout = w_oi.shape[0]
    s = int(scale_factor)
    itemsize = jnp.dtype(x_nhwc.dtype).itemsize

    if h_tile is None:
        # Biggest tile that fits comfortably in scoped VMEM (leave 25% headroom).
        h_tile = _pick_h_tile(H, W, Cin, Cout, s, itemsize,
                              budget_bytes=(3 * vmem_limit_bytes) // 4)
    assert H % h_tile == 0, "h_tile must divide H"
    n_ht = H // h_tile

    # Fold WIDTH replication into the matmul:  z[hw, rw*Cout + c] = y[hw, c]  for all rw < s.
    w_rep = jnp.tile(jnp.transpose(w_oi.astype(x_nhwc.dtype), (1, 0)), (1, s))  # (Cin, s*Cout)
    b_rep = jnp.tile(bias.astype(jnp.float32), (s,)).reshape(1, s * Cout)       # (1, s*Cout)

    # Free (row-major) view: fold H,W onto the matmul M axis.
    x_flat = x_nhwc.reshape(N, H * W, Cin)

    kernel = partial(_fpn_decoder_kernel, h_tile=h_tile, w_in=W, scale=s)

    out = pl.pallas_call(
        kernel,
        out_shape=jax.ShapeDtypeStruct((N * H, s, W, s * Cout), x_nhwc.dtype),
        grid_spec=pltpu.PrefetchScalarGridSpec(
            num_scalar_prefetch=0,
            grid=(N, n_ht),
            in_specs=[
                pl.BlockSpec((1, h_tile * W, Cin), lambda n, t: (n, t, 0)),
                # weight / bias: constant index_map -> DMA'd once, resident in VMEM
                pl.BlockSpec((Cin, s * Cout), lambda n, t: (0, 0)),
                pl.BlockSpec((1, s * Cout), lambda n, t: (0, 0)),
            ],
            out_specs=pl.BlockSpec((h_tile, s, W, s * Cout),
                                   lambda n, t: (n * n_ht + t, 0, 0, 0)),
        ),
        compiler_params=pltpu.CompilerParams(
            dimension_semantics=("parallel", "parallel"),
            vmem_limit_bytes=vmem_limit_bytes),
        cost_estimate=pl.CostEstimate(
            flops=2 * N * H * W * Cin * s * Cout,
            transcendentals=0,
            bytes_accessed=(x_nhwc.size + w_rep.size + b_rep.size
                            + N * H * s * W * s * Cout) * itemsize),
    )(x_flat, w_rep, b_rep)

    # (N*H, s, W, s*Cout) is exactly the row-major layout of NHWC (N, H*s, W*s, Cout):
    # this reshape is metadata-only (no data movement).
    return out.reshape(N, H * s, W * s, Cout)


if __name__ == "__main__":
    # FPNDecoderBlock(scale_factor=2, in_channels=4, out_channels=8)
    N, Cin, H, W = 2, 4, 16, 16
    Cout, scale = 8, 2

    key = jax.random.PRNGKey(0)
    kx, kw, kb = jax.random.split(key, 3)

    x_nchw = jax.random.normal(kx, (N, Cin, H, W), jnp.float32)
    # PyTorch nn.Conv2d(in_channels, out_channels, 1): weight (Cout, Cin, 1, 1), bias (Cout,)
    w_torch = jax.random.normal(kw, (Cout, Cin, 1, 1), jnp.float32) * 0.1
    b_torch = jax.random.normal(kb, (Cout,), jnp.float32) * 0.1

    # Layout glue ONLY for checking against the NCHW PyTorch reference; an NHWC-resident
    # model would call fpn_decoder_block_nhwc directly with no transposes.
    x_nhwc = jnp.transpose(x_nchw, (0, 2, 3, 1))                    # NCHW -> NHWC
    fn = jax.jit(partial(fpn_decoder_block_nhwc, scale_factor=scale))
    out_nhwc = fn(x_nhwc, w_torch[:, :, 0, 0], b_torch)
    out_nchw = jnp.transpose(out_nhwc, (0, 3, 1, 2))                # NHWC -> NCHW
    jax.block_until_ready(out_nchw)

    # Plain-JAX reference: interpolate(nearest, scale) then 1x1 conv (same order as PyTorch).
    x_up = jnp.repeat(jnp.repeat(x_nchw, scale, axis=2), scale, axis=3)
    ref = (jnp.einsum("nchw,oc->nohw", x_up, w_torch[:, :, 0, 0])
           + b_torch[None, :, None, None])

    assert out_nchw.shape == (N, Cout, H * scale, W * scale)
    assert jnp.allclose(out_nchw, ref, atol=1e-5, rtol=1e-5)

    print("KERNEL_OK")
</pallas_src>

<mosaic_0001>
module attributes {stable_mosaic.version = 11 : i64} {
  func.func @_fpn_decoder_kernel(%arg0: i32, %arg1: i32, %arg2: memref<1x256x4xf32, #tpu.memory_space<vmem>>, %arg3: memref<4x16xf32, #tpu.memory_space<vmem>>, %arg4: memref<1x16xf32, #tpu.memory_space<vmem>>, %arg5: memref<16x2x16x16xf32, #tpu.memory_space<vmem>>) attributes {dimension_semantics = [#tpu.dimension_semantics<parallel>, #tpu.dimension_semantics<parallel>], iteration_bounds = array<i64: 2, 1>, scalar_prefetch = 0 : i64, scratch_operands = 0 : i64, tpu.core_type = #tpu.core_type<tc>, window_params = [{transform_indices = @transform_0, window_bounds = array<i64: 1, 256, 4>}, {pipeline_mode = #tpu.pipeline_mode<synchronous>, transform_indices = @transform_1, window_bounds = array<i64: 4, 16>}, {pipeline_mode = #tpu.pipeline_mode<synchronous>, transform_indices = @transform_2, window_bounds = array<i64: 1, 16>}, {transform_indices = @transform_3, window_bounds = array<i64: 16, 2, 16, 16>}]} {
    %c0 = arith.constant 0 : index
    %c0_0 = arith.constant 0 : index
    %c0_1 = arith.constant 0 : index
    %0 = vector.load %arg2[%c0, %c0_0, %c0_1] : memref<1x256x4xf32, #tpu.memory_space<vmem>>, vector<1x256x4xf32>
    %1 = vector.shape_cast %0 : vector<1x256x4xf32> to vector<256x4xf32>
    %c0_2 = arith.constant 0 : index
    %c0_3 = arith.constant 0 : index
    %2 = vector.load %arg3[%c0_2, %c0_3] : memref<4x16xf32, #tpu.memory_space<vmem>>, vector<4x16xf32>
    %cst = arith.constant dense<0.000000e+00> : vector<256x16xf32>
    %3 = tpu.matmul %1, %2, %cst {dimension_numbers = #tpu.dot_dimension_numbers<[1], [0], [0], [1], [0, 0, 1, 1], [], []>} : vector<256x4xf32>, vector<4x16xf32>, vector<256x16xf32> -> vector<256x16xf32>
    %c0_4 = arith.constant 0 : index
    %c0_5 = arith.constant 0 : index
    %4 = vector.load %arg4[%c0_4, %c0_5] : memref<1x16xf32, #tpu.memory_space<vmem>>, vector<1x16xf32>
    %5 = vector.broadcast %4 : vector<1x16xf32> to vector<256x16xf32>
    %6 = arith.addf %3, %5 : vector<256x16xf32>
    %7 = vector.shape_cast %6 : vector<256x16xf32> to vector<16x16x16xf32>
    %c0_6 = arith.constant 0 : index
    %c0_7 = arith.constant 0 : index
    %c0_8 = arith.constant 0 : index
    %c0_9 = arith.constant 0 : index
    %8 = vector.load %arg5[%c0_6, %c0_7, %c0_8, %c0_9] : memref<16x2x16x16xf32, #tpu.memory_space<vmem>>, vector<16x1x16x16xf32>
    %9 = vector.shape_cast %8 : vector<16x1x16x16xf32> to vector<16x16x16xf32>
    %10 = vector.shape_cast %7 : vector<16x16x16xf32> to vector<16x1x16x16xf32>
    tpu.vector_store %arg5[%c0_6, %c0_7, %c0_8, %c0_9], %10 {strides = array<i32>} : memref<16x2x16x16xf32, #tpu.memory_space<vmem>>, vector<16x1x16x16xf32>,
    %c0_10 = arith.constant 0 : index
    %c1 = arith.constant 1 : index
    %c0_11 = arith.constant 0 : index
    %c0_12 = arith.constant 0 : index
    %11 = vector.load %arg5[%c0_10, %c1, %c0_11, %c0_12] : memref<16x2x16x16xf32, #tpu.memory_space<vmem>>, vector<16x1x16x16xf32>
    %12 = vector.shape_cast %11 : vector<16x1x16x16xf32> to vector<16x16x16xf32>
    %13 = vector.shape_cast %7 : vector<16x16x16xf32> to vector<16x1x16x16xf32>
    tpu.vector_store %arg5[%c0_10, %c1, %c0_11, %c0_12], %13 {strides = array<i32>} : memref<16x2x16x16xf32, #tpu.memory_space<vmem>>, vector<16x1x16x16xf32>,
    return
  }
  func.func @transform_0(%arg0: i32, %arg1: i32) -> (i32, i32, i32) {
    %c0_i32 = arith.constant 0 : i32
    %c0_i32_0 = arith.constant 0 : i32
    return %arg0, %arg1, %c0_i32 : i32, i32, i32
  }
  func.func @transform_1(%arg0: i32, %arg1: i32) -> (i32, i32) {
    %c0_i32 = arith.constant 0 : i32
    %c0_i32_0 = arith.constant 0 : i32
    %c0_i32_1 = arith.constant 0 : i32
    return %c0_i32, %c0_i32_0 : i32, i32
  }
  func.func @transform_2(%arg0: i32, %arg1: i32) -> (i32, i32) {
    %c0_i32 = arith.constant 0 : i32
    %c0_i32_0 = arith.constant 0 : i32
    %c0_i32_1 = arith.constant 0 : i32
    return %c0_i32, %c0_i32_0 : i32, i32
  }
  func.func @transform_3(%arg0: i32, %arg1: i32) -> (i32, i32, i32, i32) {
    %c1_i32 = arith.constant 1 : i32
    %0 = arith.muli %arg0, %c1_i32 : i32
    %1 = arith.addi %0, %arg1 : i32
    %c0_i32 = arith.constant 0 : i32
    %c0_i32_0 = arith.constant 0 : i32
    %c0_i32_1 = arith.constant 0 : i32
    %c0_i32_2 = arith.constant 0 : i32
    return %1, %c0_i32, %c0_i32_0, %c0_i32_1 : i32, i32, i32, i32
  }
}

</mosaic_0001>

<llo_original>
// kernel: tile.18
$region0: #{tile.18}
  #allocation0 [shape = 's32[1]{0}', space=sflag, size = 0x4, scoped, tag = 'scoped memory for tile.18']
  %s0 = inlined_call_operand.vmem [shape: f32[8], index: 0, kind: input, shape index: {}]
  %s1 = inlined_call_operand.vmem [shape: f32[2,8], index: 1, kind: output, shape index: {}]
  // Predicated region
  $region2: #{tile.18} parent=0 // pred_check
    _
  $region3: #{tile.18} parent=0 // pred_check_branch
    %3 = sbr.rel (0) target = $region5
  $region4: #{tile.18} parent=0 // pred_region
    _
  $region5: #{tile.18} parent=0 // pred_fallthru
    _
  %v4 = vld [vmem:[%s0] ss:$0 sm:$0xff]
  %5 = vst [vmem:[%s1] sm:$0x3] %v4

// kernel: tile.14
$region0: #{tile.14}
  %s0 = inlined_call_operand.vmem [shape: f32[4,2,8], index: 0, kind: input, shape index: {}]
  %s1 = inlined_call_operand.vmem [shape: f32[4,16], index: 1, kind: output, shape index: {}]
  $region1: #{tile.14} parent=0
    #allocation0 [shape = 'u8[4096]{0}', space=vmem, size = 0x1000, scoped, tag = 'scoped mem for output reshape']
    #allocation1 [shape = 'u8[16384]{0}', space=vmem, size = 0x4000, scoped, tag = 'scoped mem for input reshape']
    %s3 = sshllo.u32 0, 2
    %s4 = smul.addr 2, 3
    %s5 = scalar_lea.vmem %s0, %s4
    %v6 = vld [vmem:[%s5] sm:%s3]
    %s7 = scalar_lea.vmem [#allocation1], 24
    %8 = vst [vmem:[%s7] sm:%s3] %v6
    %s9 = smul.addr 2, 2
    %s10 = scalar_lea.vmem %s0, %s9
    %v11 = vld [vmem:[%s10] sm:%s3]
    %s12 = scalar_lea.vmem [#allocation1], 16
    %13 = vst [vmem:[%s12] sm:%s3] %v11
    %s14 = scalar_lea.vmem %s0, 2
    %v15 = vld [vmem:[%s14] sm:%s3]
    %s16 = scalar_lea.vmem [#allocation1], 8
    %17 = vst [vmem:[%s16] sm:%s3] %v15
    %v18 = vld [vmem:[%s0] sm:%s3]
    %19 = vst [vmem:[#allocation1] sm:%s3] %v18
    %v20 = vld [vmem:[#allocation1] ss:$8 sm:$0xf]
    %vm21 = vcmask 64512
    %22 = vst.msk [vmem:[#allocation0] sm:$0xf] %vm21, %v20
    %s23 = scalar_lea.vmem [#allocation1], 1
    %v24 = vld [vmem:[%s23] ss:$8 sm:$0xf]
    %25 = vrot.lane.b32.xlu0 %v24, 8
    %v26 = vpop.permute.xlu0 %25
    %vm27 = vcmask 130112
    %28 = vst.msk [vmem:[#allocation0] sm:$0xf] %vm27, %v26
    %s30 = sshllo.u32 0, 4
    %v32 = vld [vmem:[#allocation0] sm:%s30]
    %s33 = sshllo.u32 0, 4
    %34 = vst [vmem:[%s1] sm:%s33] %v32

// kernel: tile.19
$region0: #{tile.19}
  %s0 = inlined_call_operand.vmem [shape: f32[2,8], index: 0, kind: input, shape index: {}]
  %s1 = inlined_call_operand.vmem [shape: f32[1,16], index: 1, kind: output, shape index: {}]
  $region1: #{tile.19} parent=0
    #allocation0 [shape = 'u8[4096]{0}', space=vmem, size = 0x1000, scoped, tag = 'scoped mem for output reshape']
    #allocation1 [shape = 'u8[4096]{0}', space=vmem, size = 0x1000, scoped, tag = 'scoped mem for input reshape']
    %s3 = sshllo.u32 0, 2
    %v4 = vld [vmem:[%s0] sm:%s3]
    %5 = vst [vmem:[#allocation1] sm:%s3] %v4
    %v6 = vld [vmem:[#allocation1] sm:$0x1]
    %vm7 = vcmask 64512
    %8 = vst.msk [vmem:[#allocation0] sm:$0x1] %vm7, %v6
    %s9 = scalar_lea.vmem [#allocation1], 1
    %v10 = vld [vmem:[%s9] sm:$0x1]
    %11 = vrot.lane.b32.xlu0 %v10, 8
    %v12 = vpop.permute.xlu0 %11
    %vm13 = vcmask 130112
    %14 = vst.msk [vmem:[#allocation0] sm:$0x1] %vm13, %v12
    %s16 = sshllo.u32 0, 1
    %v18 = vld [vmem:[#allocation0] sm:%s16]
    %s19 = sshllo.u32 0, 1
    %20 = vst [vmem:[%s1] sm:%s19] %v18

// kernel: fpn_decoder_block_nhwc.1
$region0: #{fpn_decoder_block_nhwc.1}
  #allocation0 [shape = 'u32[]', space=smem, size = 0x4, offset = 0x4, fixed_abs, tag = 'smem constant byte address 0x4 - core index']
  #allocation1 [shape = 'u32[144,128]{1,0:T(1,128)}', space=vmem, size = 0x12000, scoped, tag = 'internal scratch']
  %s0 = inlined_call_operand.vmem [shape: f32[2,256,4], index: 0, kind: input, shape index: {}]
  %s1 = inlined_call_operand.vmem [shape: f32[4,16], index: 1, kind: input, shape index: {}]
  %s2 = inlined_call_operand.vmem [shape: f32[1,16], index: 2, kind: input, shape index: {}]
  %s3 = inlined_call_operand.vmem [shape: f32[32,2,16,16], index: 3, kind: output, shape index: {}]
  %s4 = sld [smem:[#allocation0]]
  $region45: #{fpn_decoder_block_nhwc.1} parent=0
    _
  %s6 = ssub.s32 1, %s4
  %s7 = scalar_select 0, %s6, %s4
  loop: start=0, step=1, limit=4
  $region2: #{fpn_decoder_block_nhwc.1} parent=0 // loop_pre_header
    _
  $region3: #{fpn_decoder_block_nhwc.1} parent=0 // loop_header
    %s9 = sphi 0, %s13
    %p10 = scmp.ge.s32.totalorder %s9, 4
    %s16 = sphi 0, %s28
    %s17 = sphi 0, %s24
    %s18 = sphi 0, %s16
    %s19 = sphi 0, %s17
    %s20 = sphi 0, %s18
    %s21 = sphi 0, %s19
    %s33 = sphi 0, %s35
    %s36 = sphi 0, %s33
    %s37 = sphi 0, %s36
    %s53 = sphi 0, %s37
    %s57 = sphi 0, %s57
    %s59 = sphi 0, %s57
    %s60 = sphi 0, %s59
    %s74 = sphi 0, %s60
    %s78 = sphi 0, %s78
    %s80 = sphi 0, %s78
    %s81 = sphi 0, %s80
    %s95 = sphi 0, %s81
    %s103 = sphi 0, %s105
    %s106 = sphi 0, %s103
    %s107 = sphi 0, %s106
    %s123 = sphi 0, %s107
  $region4: #{fpn_decoder_block_nhwc.1} parent=0 // loop_header_branch
    %12 = sbr.rel (%p10) target = $region8
  $region5: #{fpn_decoder_block_nhwc.1} parent=0 // loop_body
    %s14 = ssub.s32 %s9, 1
    %s15 = ssub.s32 %s9, 2
    %s22 = sadd.s32 1, %s17
    %p23 = scmp.ge.s32.totalorder %s22, 1
    %s24 = scalar_select %p23, 0, %s22
    %s25 = sadd.s32 1, %s16
    %s26 = scalar_select %p23, %s25, %s16
    %p27 = scmp.ge.s32.totalorder %s26, 2
    %s28 = scalar_select %p27, 0, %s26
    %s29 = ssub.s32 %s16, %s28
    %s30 = ssub.s32 %s17, %s24
    %s31 = sor.u32 %s29, %s30
    %p32 = scmp.eq.s32.totalorder %s31, 0
    %s34 = sadd.s32 %s33, 1
    %s35 = scalar_select %p32, %s33, %s34
    %p38 = pneg %p32
    %p39 = scmp.eq.s32.totalorder %s9, 1
    %p40 = por %p38, %p39
    %p41 = scmp.ne.s32.totalorder %s33, %s36
    %p42 = scmp.eq.s32.totalorder %s9, 0
    %p43 = por %p41, %p42
    %p44 = scmp.ne.s32.totalorder %s33, %s36
    %p45 = scmp.eq.s32.totalorder %s14, 1
    %p46 = por %p44, %p45
    %p47 = scmp.ne.s32.totalorder %s36, %s37
    %p48 = scmp.eq.s32.totalorder %s14, 0
    %p49 = por %p47, %p48
    %p50 = scmp.ne.s32.totalorder %s36, %s37
    %p51 = scmp.eq.s32.totalorder %s15, 1
    %p52 = por %p50, %p51
    %p54 = scmp.ne.s32.totalorder %s37, %s53
    %p55 = scmp.eq.s32.totalorder %s15, 0
    %p56 = por %p54, %p55
    %s58 = sadd.s32 %s57, 1
    %p61 = scmp.eq.s32.totalorder %s9, 1
    %p62 = scmp.ne.s32.totalorder %s57, %s59
    %p63 = scmp.eq.s32.totalorder %s9, 0
    %p64 = por %p62, %p63
    %p65 = scmp.ne.s32.totalorder %s57, %s59
    %p66 = scmp.eq.s32.totalorder %s14, 1
    %p67 = por %p65, %p66
    %p68 = scmp.ne.s32.totalorder %s59, %s60
    %p69 = scmp.eq.s32.totalorder %s14, 0
    %p70 = por %p68, %p69
    %p71 = scmp.ne.s32.totalorder %s59, %s60
    %p72 = scmp.eq.s32.totalorder %s15, 1
    %p73 = por %p71, %p72
    %p75 = scmp.ne.s32.totalorder %s60, %s74
    %p76 = scmp.eq.s32.totalorder %s15, 0
    %p77 = por %p75, %p76
    %s79 = sadd.s32 %s78, 1
    %p82 = scmp.eq.s32.totalorder %s9, 1
    %p83 = scmp.ne.s32.totalorder %s78, %s80
    %p84 = scmp.eq.s32.totalorder %s9, 0
    %p85 = por %p83, %p84
    %p86 = scmp.ne.s32.totalorder %s78, %s80
    %p87 = scmp.eq.s32.totalorder %s14, 1
    %p88 = por %p86, %p87
    %p89 = scmp.ne.s32.totalorder %s80, %s81
    %p90 = scmp.eq.s32.totalorder %s14, 0
    %p91 = por %p89, %p90
    %p92 = scmp.ne.s32.totalorder %s80, %s81
    %p93 = scmp.eq.s32.totalorder %s15, 1
    %p94 = por %p92, %p93
    %p96 = scmp.ne.s32.totalorder %s81, %s95
    %p97 = scmp.eq.s32.totalorder %s15, 0
    %p98 = por %p96, %p97
    %s99 = sadd.s32 %s16, %s17
    %s100 = sadd.s32 %s28, %s24
    %s101 = ssub.s32 %s99, %s100
    %p102 = scmp.eq.s32.totalorder %s101, 0
    %s104 = sadd.s32 %s103, 1
    %s105 = scalar_select %p102, %s103, %s104
    %p108 = pneg %p102
    %p109 = scmp.eq.s32.totalorder %s9, 1
    %p110 = por %p108, %p109
    %p111 = scmp.ne.s32.totalorder %s103, %s106
    %p112 = scmp.eq.s32.totalorder %s9, 0
    %p113 = por %p111, %p112
    %p114 = scmp.ne.s32.totalorder %s103, %s106
    %p115 = scmp.eq.s32.totalorder %s14, 1
    %p116 = por %p114, %p115
    %p117 = scmp.ne.s32.totalorder %s106, %s107
    %p118 = scmp.eq.s32.totalorder %s14, 0
    %p119 = por %p117, %p118
    %p120 = scmp.ne.s32.totalorder %s106, %s107
    %p121 = scmp.eq.s32.totalorder %s15, 1
    %p122 = por %p120, %p121
    %p124 = scmp.ne.s32.totalorder %s107, %s123
    %p125 = scmp.eq.s32.totalorder %s15, 0
    %p126 = por %p124, %p125
    %p127 = scmp.le.s32.totalorder 1, %s9
    %p128 = scmp.lt.s32.totalorder %s9, 3
    %p129 = pnand %p127, %p128
    %p130 = pneg %p129
    // Predicated region
    $region9: #{fpn_decoder_block_nhwc.1} parent=5 // pred_check
      _
    $region10: #{fpn_decoder_block_nhwc.1} parent=5 // pred_check_branch
      %132 = sbr.rel (%p129) target = $region12
    $region11: #{fpn_decoder_block_nhwc.1} parent=5 // pred_region
      %s133 = ssub.s32 %s9, 1
      // Predicated region
      $region13: #{fpn_decoder_block_nhwc.1} parent=11 // pred_check
        %p134 = pneg %p70
      $region14: #{fpn_decoder_block_nhwc.1} parent=11 // pred_check_branch
        %136 = sbr.rel (%p134) target = $region16
      $region15: #{fpn_decoder_block_nhwc.1} parent=11 // pred_region
        _
      $region16: #{fpn_decoder_block_nhwc.1} parent=11 // pred_fallthru
        _
      // Predicated region
      $region17: #{fpn_decoder_block_nhwc.1} parent=11 // pred_check
        %p137 = pneg %p91
      $region18: #{fpn_decoder_block_nhwc.1} parent=11 // pred_check_branch
        %139 = sbr.rel (%p137) target = $region20
      $region19: #{fpn_decoder_block_nhwc.1} parent=11 // pred_region
        _
      $region20: #{fpn_decoder_block_nhwc.1} parent=11 // pred_fallthru
        _
    $region12: #{fpn_decoder_block_nhwc.1} parent=5 // pred_fallthru
      _
    %p140 = scmp.lt.s32.totalorder %s9, 2
    // Predicated region
    $region21: #{fpn_decoder_block_nhwc.1} parent=5 // pred_check
      %p141 = pneg %p140
    $region22: #{fpn_decoder_block_nhwc.1} parent=5 // pred_check_branch
      %143 = sbr.rel (%p141) target = $region24
    $region23: #{fpn_decoder_block_nhwc.1} parent=5 // pred_region
      // Predicated region
      $region25: #{fpn_decoder_block_nhwc.1} parent=23 // pred_check
        %p144 = pneg %p43
      $region26: #{fpn_decoder_block_nhwc.1} parent=23 // pred_check_branch
        %146 = sbr.rel (%p144) target = $region28
      $region27: #{fpn_decoder_block_nhwc.1} parent=23 // pred_region
        %s147 = smul.u32 32, %s17
        %p148 = scmp.lt.s32.totalorder %s16, 1
        %s149 = scalar_select %p148, %s16, 1
        %p150 = scmp.lt.s32.totalorder %s147, 31
        %s151 = scalar_select %p150, %s147, 31
        %s152 = smul.addr %s149, 32
        %s153 = sadd.s32 %s151, %s152
        %s154 = smul.addr %s153, 8
        %s155 = scalar_lea.vmem %s0, %s154
        %s156 = smul.u32 32, %s17
      $region28: #{fpn_decoder_block_nhwc.1} parent=23 // pred_fallthru
        _
    $region24: #{fpn_decoder_block_nhwc.1} parent=5 // pred_fallthru
      _
    %p157 = scmp.le.s32.totalorder 1, %s9
    %p158 = scmp.lt.s32.totalorder %s9, 3
    %p159 = pnand %p157, %p158
    %p160 = pneg %p159
    // Predicated region
    $region29: #{fpn_decoder_block_nhwc.1} parent=5 // pred_check
      _
    $region30: #{fpn_decoder_block_nhwc.1} parent=5 // pred_check_branch
      %162 = sbr.rel (%p159) target = $region32
    $region31: #{fpn_decoder_block_nhwc.1} parent=5 // pred_region
      %s163 = ssub.s32 %s9, 1
      %s164 = smul.u32 32, %s19
      %p165 = scmp.lt.s32.totalorder %s18, 1
      %s166 = scalar_select %p165, %s18, 1
      %p167 = scmp.lt.s32.totalorder %s164, 31
      %s168 = scalar_select %p167, %s164, 31
      %s169 = smul.addr %s166, 32
      %s170 = sadd.s32 %s168, %s169
      %s171 = smul.addr %s170, 8
      %s172 = scalar_lea.vmem %s0, %s171
      %p173 = pneg %p49
      %p174 = pneg %p46
      %p175 = pneg %p70
      %p176 = pneg %p67
      %p177 = pneg %p91
      %p178 = pneg %p88
      %p179 = pneg %p119
      %p180 = pneg %p116
      %s181 = sadd.s32 %s18, %s19
      %s182 = smul.u32 16, %s181
      %p183 = scmp.lt.s32.totalorder %s182, 31
      %s184 = scalar_select %p183, %s182, 31
      %s185 = smul.addr %s184, 4
      %s186 = smul.addr %s185, 8
      %s187 = scalar_lea.vmem %s3, %s186
      %s188 = smul.u32 32, %s19
      %p189 = scmp.lt.s32.totalorder %s18, 1
      %s190 = scalar_select %p189, %s18, 1
      %p191 = scmp.lt.s32.totalorder %s188, 31
      %s192 = scalar_select %p191, %s188, 31
      %s193 = smul.addr %s190, 32
      %s194 = sadd.s32 %s192, %s193
      %s195 = smul.addr %s194, 8
      %s196 = scalar_lea.vmem %s0, %s195
      %s197 = smul.u32 32, %s19
      %s198 = sadd.s32 %s18, %s19
      %s199 = smul.u32 16, %s198
      %p200 = scmp.lt.s32.totalorder %s199, 31
      %s201 = scalar_select %p200, %s199, 31
      %s202 = smul.addr %s201, 4
      %s203 = smul.addr %s202, 8
      %s204 = scalar_lea.vmem %s3, %s203
      %s205 = sadd.s32 %s18, %s19
      %s206 = smul.u32 16, %s205
      %v207 = vld [vmem:[%s196] sm:$0xff]
      %v208 = vld [vmem:[%s196 + $0x8] sm:$0xff]
      %v209 = vld [vmem:[%s196 + $0x10] sm:$0xff]
      %v210 = vld [vmem:[%s196 + $0x18] sm:$0xff]
      %v211 = vld [vmem:[%s196 + $0x20] sm:$0xff]
      %v212 = vld [vmem:[%s196 + $0x28] sm:$0xff]
      %v213 = vld [vmem:[%s196 + $0x30] sm:$0xff]
      %v214 = vld [vmem:[%s196 + $0x38] sm:$0xff]
      %v215 = vld [vmem:[%s196 + $0x40] sm:$0xff]
      %v216 = vld [vmem:[%s196 + $0x48] sm:$0xff]
      %v217 = vld [vmem:[%s196 + $0x50] sm:$0xff]
      %v218 = vld [vmem:[%s196 + $0x58] sm:$0xff]
      %v219 = vld [vmem:[%s196 + $0x60] sm:$0xff]
      %v220 = vld [vmem:[%s196 + $0x68] sm:$0xff]
      %v221 = vld [vmem:[%s196 + $0x70] sm:$0xff]
      %v222 = vld [vmem:[%s196 + $0x78] sm:$0xff]
      %v223 = vld [vmem:[%s196 + $0x80] sm:$0xff]
      %v224 = vld [vmem:[%s196 + $0x88] sm:$0xff]
      %v225 = vld [vmem:[%s196 + $0x90] sm:$0xff]
      %v226 = vld [vmem:[%s196 + $0x98] sm:$0xff]
      %v227 = vld [vmem:[%s196 + $0xa0] sm:$0xff]
      %v228 = vld [vmem:[%s196 + $0xa8] sm:$0xff]
      %v229 = vld [vmem:[%s196 + $0xb0] sm:$0xff]
      %v230 = vld [vmem:[%s196 + $0xb8] sm:$0xff]
      %v231 = vld [vmem:[%s196 + $0xc0] sm:$0xff]
      %v232 = vld [vmem:[%s196 + $0xc8] sm:$0xff]
      %v233 = vld [vmem:[%s196 + $0xd0] sm:$0xff]
      %v234 = vld [vmem:[%s196 + $0xd8] sm:$0xff]
      %v235 = vld [vmem:[%s196 + $0xe0] sm:$0xff]
      %v236 = vld [vmem:[%s196 + $0xe8] sm:$0xff]
      %v237 = vld [vmem:[%s196 + $0xf0] sm:$0xff]
      %v238 = vld [vmem:[%s196 + $0xf8] sm:$0xff]
      %v239 = vld [vmem:[%s1] sm:$0xf]
      %v240 = vld [vmem:[%s2] sm:$0x1]
      %v242 = vlaneseq
      %v243 = vshrl.u32 %v242, 7
      %v244 = vsub.s32 0, %v243
      %v245 = vrot.slane %v240, %v244
      %vm247 = vcmask 31744
      %v249 = vsel %vm247, %v207, 0
      %v252 = vsel %vm247, %v208, 0
      %v255 = vsel %vm247, %v209, 0
      %v258 = vsel %vm247, %v210, 0
      %v261 = vsel %vm247, %v211, 0
      %v264 = vsel %vm247, %v212, 0
      %v267 = vsel %vm247, %v213, 0
      %v270 = vsel %vm247, %v214, 0
      %v273 = vsel %vm247, %v215, 0
      %v276 = vsel %vm247, %v216, 0
      %v279 = vsel %vm247, %v217, 0
      %v282 = vsel %vm247, %v218, 0
      %v285 = vsel %vm247, %v219, 0
      %v288 = vsel %vm247, %v220, 0
      %v291 = vsel %vm247, %v221, 0
      %v294 = vsel %vm247, %v222, 0
      %v297 = vsel %vm247, %v223, 0
      %v300 = vsel %vm247, %v224, 0
      %v303 = vsel %vm247, %v225, 0
      %v306 = vsel %vm247, %v226, 0
      %v309 = vsel %vm247, %v227, 0
      %v312 = vsel %vm247, %v228, 0
      %v315 = vsel %vm247, %v229, 0
      %v318 = vsel %vm247, %v230, 0
      %v321 = vsel %vm247, %v231, 0
      %v324 = vsel %vm247, %v232, 0
      %v327 = vsel %vm247, %v233, 0
      %v330 = vsel %vm247, %v234, 0
      %v333 = vsel %vm247, %v235, 0
      %v336 = vsel %vm247, %v236, 0
      %v339 = vsel %vm247, %v237, 0
      %v342 = vsel %vm247, %v238, 0
      %vm344 = vcmask 1043456
      %v346 = vsel %vm344, %v239, 0
      %348 = vmatprep.subr.mxu0 0.0
      %349 = vmatpush1.msra.mxu0 %v346
      %350 = vmatprep.subr.mxu0 0.0
      %351 = vmatpush1.msra.mxu0 0.0
      %352 = vmatprep.subr.mxu0 0.0
      %353 = vmatpush1.msra.mxu0 0.0
      %354 = vmatprep.subr.mxu0 0.0
      %355 = vmatpush1.msra.mxu0 0.0
      %356 = vmatprep.subr.mxu0 0.0
      %357 = vmatpush1.msra.mxu0 0.0
      %358 = vmatprep.subr.mxu0 0.0
      %359 = vmatpush1.msra.mxu0 0.0
      %360 = vmatprep.subr.mxu0 0.0
      %361 = vmatpush1.msra.mxu0 0.0
      %362 = vmatprep.subr.mxu0 0.0
      %363 = vmatpush1.msra.mxu0 0.0
      %364 = vmatprep.subr.mxu0 0.0
      %365 = vmatpush1.msra.mxu0 0.0
      %366 = vmatprep.subr.mxu0 0.0
      %367 = vmatpush1.msra.mxu0 0.0
      %368 = vmatprep.subr.mxu0 0.0
      %369 = vmatpush1.msra.mxu0 0.0
      %370 = vmatprep.subr.mxu0 0.0
      %371 = vmatpush1.msra.mxu0 0.0
      %372 = vmatprep.subr.mxu0 0.0
      %373 = vmatpush1.msra.mxu0 0.0
      %374 = vmatprep.subr.mxu0 0.0
      %375 = vmatpush1.msra.mxu0 0.0
      %376 = vmatprep.subr.mxu0 0.0
      %377 = vmatpush1.msra.mxu0 0.0
      %378 = vmatprep.subr.mxu0 0.0
      %379 = vmatpush1.msra.mxu0 0.0
      %380 = vmatprep.subr.mxu0 0.0
      %381 = vmatpush1.msra.mxu0 0.0
      %382 = vmatprep.subr.mxu0 0.0
      %383 = vmatpush1.msra.mxu0 0.0
      %384 = vmatprep.subr.mxu0 0.0
      %385 = vmatpush1.msra.mxu0 0.0
      %386 = vmatprep.subr.mxu0 0.0
      %387 = vmatpush1.msra.mxu0 0.0
      %388 = vmatprep.subr.mxu0 0.0
      %389 = vmatpush1.msra.mxu0 0.0
      %390 = vmatprep.subr.mxu0 0.0
      %391 = vmatpush1.msra.mxu0 0.0
      %392 = vmatprep.subr.mxu0 0.0
      %393 = vmatpush1.msra.mxu0 0.0
      %394 = vmatprep.subr.mxu0 0.0
      %395 = vmatpush1.msra.mxu0 0.0
      %396 = vmatprep.subr.mxu0 0.0
      %397 = vmatpush1.msra.mxu0 0.0
      %398 = vmatprep.subr.mxu0 0.0
      %399 = vmatpush1.msra.mxu0 0.0
      %400 = vmatprep.subr.mxu0 0.0
      %401 = vmatpush1.msra.mxu0 0.0
      %402 = vmatprep.subr.mxu0 0.0
      %403 = vmatpush1.msra.mxu0 0.0
      %404 = vmatprep.subr.mxu0 0.0
      %405 = vmatpush1.msra.mxu0 0.0
      %406 = vmatprep.subr.mxu0 0.0
      %407 = vmatpush1.msra.mxu0 0.0
      %408 = vmatprep.subr.mxu0 0.0
      %409 = vmatpush1.msra.mxu0 0.0
      %410 = vmatprep.subr.mxu0 0.0
      %411 = vmatpush1.msra.mxu0 0.0
      %412 = vmatprep.mubr.f32.mxu0 0.0
      %413 = vmatmul.mubr.f32.gmra.mrb[0].mxu0 %v249
      %v414 = vpop.f32.mrb[0].mxu0
      %v415 = vadd.f32 %v245, %v414
      %v416 = vpop.f32.mrb[0].mxu0
      %417 = vmatprep.mubr.f32.mxu0 0.0
      %418 = vmatmul.mubr.f32.gmra.mrb[0].mxu0 %v252
      %v419 = vpop.f32.mrb[0].mxu0
      %v420 = vadd.f32 %v245, %v419
      %v421 = vpop.f32.mrb[0].mxu0
      %422 = vmatprep.mubr.f32.mxu0 0.0
      %423 = vmatmul.mubr.f32.gmra.mrb[0].mxu0 %v255
      %v424 = vpop.f32.mrb[0].mxu0
      %v425 = vadd.f32 %v245, %v424
      %v426 = vpop.f32.mrb[0].mxu0
      %427 = vmatprep.mubr.f32.mxu0 0.0
      %428 = vmatmul.mubr.f32.gmra.mrb[0].mxu0 %v258
      %v429 = vpop.f32.mrb[0].mxu0
      %v430 = vadd.f32 %v245, %v429
      %v431 = vpop.f32.mrb[0].mxu0
      %432 = vmatprep.mubr.f32.mxu0 0.0
      %433 = vmatmul.mubr.f32.gmra.mrb[0].mxu0 %v261
      %v434 = vpop.f32.mrb[0].mxu0
      %v435 = vadd.f32 %v245, %v434
      %v436 = vpop.f32.mrb[0].mxu0
      %437 = vmatprep.mubr.f32.mxu0 0.0
      %438 = vmatmul.mubr.f32.gmra.mrb[0].mxu0 %v264
      %v439 = vpop.f32.mrb[0].mxu0
      %v440 = vadd.f32 %v245, %v439
      %v441 = vpop.f32.mrb[0].mxu0
      %442 = vmatprep.mubr.f32.mxu0 0.0
      %443 = vmatmul.mubr.f32.gmra.mrb[0].mxu0 %v267
      %v444 = vpop.f32.mrb[0].mxu0
      %v445 = vadd.f32 %v245, %v444
      %v446 = vpop.f32.mrb[0].mxu0
      %447 = vmatprep.mubr.f32.mxu0 0.0
      %448 = vmatmul.mubr.f32.gmra.mrb[0].mxu0 %v270
      %v449 = vpop.f32.mrb[0].mxu0
      %v450 = vadd.f32 %v245, %v449
      %v451 = vpop.f32.mrb[0].mxu0
      %452 = vmatprep.mubr.f32.mxu0 0.0
      %453 = vmatmul.mubr.f32.gmra.mrb[0].mxu0 %v273
      %v454 = vpop.f32.mrb[0].mxu0
      %v455 = vadd.f32 %v245, %v454
      %v456 = vpop.f32.mrb[0].mxu0
      %457 = vmatprep.mubr.f32.mxu0 0.0
      %458 = vmatmul.mubr.f32.gmra.mrb[0].mxu0 %v276
      %v459 = vpop.f32.mrb[0].mxu0
      %v460 = vadd.f32 %v245, %v459
      %v461 = vpop.f32.mrb[0].mxu0
      %462 = vmatprep.mubr.f32.mxu0 0.0
      %463 = vmatmul.mubr.f32.gmra.mrb[0].mxu0 %v279
      %v464 = vpop.f32.mrb[0].mxu0
      %v465 = vadd.f32 %v245, %v464
      %v466 = vpop.f32.mrb[0].mxu0
      %467 = vmatprep.mubr.f32.mxu0 0.0
      %468 = vmatmul.mubr.f32.gmra.mrb[0].mxu0 %v282
      %v469 = vpop.f32.mrb[0].mxu0
      %v470 = vadd.f32 %v245, %v469
      %v471 = vpop.f32.mrb[0].mxu0
      %472 = vmatprep.mubr.f32.mxu0 0.0
      %473 = vmatmul.mubr.f32.gmra.mrb[0].mxu0 %v285
      %v474 = vpop.f32.mrb[0].mxu0
      %v475 = vadd.f32 %v245, %v474
      %v476 = vpop.f32.mrb[0].mxu0
      %477 = vmatprep.mubr.f32.mxu0 0.0
      %478 = vmatmul.mubr.f32.gmra.mrb[0].mxu0 %v288
      %v479 = vpop.f32.mrb[0].mxu0
      %v480 = vadd.f32 %v245, %v479
      %v481 = vpop.f32.mrb[0].mxu0
      %482 = vmatprep.mubr.f32.mxu0 0.0
      %483 = vmatmul.mubr.f32.gmra.mrb[0].mxu0 %v291
      %v484 = vpop.f32.mrb[0].mxu0
      %v485 = vadd.f32 %v245, %v484
      %v486 = vpop.f32.mrb[0].mxu0
      %487 = vmatprep.mubr.f32.mxu0 0.0
      %488 = vmatmul.mubr.f32.gmra.mrb[0].mxu0 %v294
      %v489 = vpop.f32.mrb[0].mxu0
      %v490 = vadd.f32 %v245, %v489
      %v491 = vpop.f32.mrb[0].mxu0
      %492 = vmatprep.mubr.f32.mxu0 0.0
      %493 = vmatmul.mubr.f32.gmra.mrb[0].mxu0 %v297
      %v494 = vpop.f32.mrb[0].mxu0
      %v495 = vadd.f32 %v245, %v494
      %v496 = vpop.f32.mrb[0].mxu0
      %497 = vmatprep.mubr.f32.mxu0 0.0
      %498 = vmatmul.mubr.f32.gmra.mrb[0].mxu0 %v300
      %v499 = vpop.f32.mrb[0].mxu0
      %v500 = vadd.f32 %v245, %v499
      %v501 = vpop.f32.mrb[0].mxu0
      %502 = vmatprep.mubr.f32.mxu0 0.0
      %503 = vmatmul.mubr.f32.gmra.mrb[0].mxu0 %v303
      %v504 = vpop.f32.mrb[0].mxu0
      %v505 = vadd.f32 %v245, %v504
      %v506 = vpop.f32.mrb[0].mxu0
      %507 = vmatprep.mubr.f32.mxu0 0.0
      %508 = vmatmul.mubr.f32.gmra.mrb[0].mxu0 %v306
      %v509 = vpop.f32.mrb[0].mxu0
      %v510 = vadd.f32 %v245, %v509
      %v511 = vpop.f32.mrb[0].mxu0
      %512 = vmatprep.mubr.f32.mxu0 0.0
      %513 = vmatmul.mubr.f32.gmra.mrb[0].mxu0 %v309
      %v514 = vpop.f32.mrb[0].mxu0
      %v515 = vadd.f32 %v245, %v514
      %v516 = vpop.f32.mrb[0].mxu0
      %517 = vmatprep.mubr.f32.mxu0 0.0
      %518 = vmatmul.mubr.f32.gmra.mrb[0].mxu0 %v312
      %v519 = vpop.f32.mrb[0].mxu0
      %v520 = vadd.f32 %v245, %v519
      %v521 = vpop.f32.mrb[0].mxu0
      %522 = vmatprep.mubr.f32.mxu0 0.0
      %523 = vmatmul.mubr.f32.gmra.mrb[0].mxu0 %v315
      %v524 = vpop.f32.mrb[0].mxu0
      %v525 = vadd.f32 %v245, %v524
      %v526 = vpop.f32.mrb[0].mxu0
      %527 = vmatprep.mubr.f32.mxu0 0.0
      %528 = vmatmul.mubr.f32.gmra.mrb[0].mxu0 %v318
      %v529 = vpop.f32.mrb[0].mxu0
      %v530 = vadd.f32 %v245, %v529
      %v531 = vpop.f32.mrb[0].mxu0
      %532 = vmatprep.mubr.f32.mxu0 0.0
      %533 = vmatmul.mubr.f32.gmra.mrb[0].mxu0 %v321
      %v534 = vpop.f32.mrb[0].mxu0
      %v535 = vadd.f32 %v245, %v534
      %v536 = vpop.f32.mrb[0].mxu0
      %537 = vmatprep.mubr.f32.mxu0 0.0
      %538 = vmatmul.mubr.f32.gmra.mrb[0].mxu0 %v324
      %v539 = vpop.f32.mrb[0].mxu0
      %v540 = vadd.f32 %v245, %v539
      %v541 = vpop.f32.mrb[0].mxu0
      %542 = vmatprep.mubr.f32.mxu0 0.0
      %543 = vmatmul.mubr.f32.gmra.mrb[0].mxu0 %v327
      %v544 = vpop.f32.mrb[0].mxu0
      %v545 = vadd.f32 %v245, %v544
      %v546 = vpop.f32.mrb[0].mxu0
      %547 = vmatprep.mubr.f32.mxu0 0.0
      %548 = vmatmul.mubr.f32.gmra.mrb[0].mxu0 %v330
      %v549 = vpop.f32.mrb[0].mxu0
      %v550 = vadd.f32 %v245, %v549
      %v551 = vpop.f32.mrb[0].mxu0
      %552 = vmatprep.mubr.f32.mxu0 0.0
      %553 = vmatmul.mubr.f32.gmra.mrb[0].mxu0 %v333
      %v554 = vpop.f32.mrb[0].mxu0
      %v555 = vadd.f32 %v245, %v554
      %v556 = vpop.f32.mrb[0].mxu0
      %557 = vmatprep.mubr.f32.mxu0 0.0
      %558 = vmatmul.mubr.f32.gmra.mrb[0].mxu0 %v336
      %v559 = vpop.f32.mrb[0].mxu0
      %v560 = vadd.f32 %v245, %v559
      %v561 = vpop.f32.mrb[0].mxu0
      %562 = vmatprep.mubr.f32.mxu0 0.0
      %563 = vmatmul.mubr.f32.gmra.mrb[0].mxu0 %v339
      %v564 = vpop.f32.mrb[0].mxu0
      %v565 = vadd.f32 %v245, %v564
      %v566 = vpop.f32.mrb[0].mxu0
      %567 = vmatprep.mubr.f32.mxu0 0.0
      %568 = vmatmul.mubr.f32.gmra.mrb[0].mxu0 %v342
      %v569 = vpop.f32.mrb[0].mxu0
      %v570 = vadd.f32 %v245, %v569
      %v571 = vpop.f32.mrb[0].mxu0
      %572 = vdwg.mxu0
      %vm573 = vcmask 130048
      %574 = vst.msk [vmem:[%s204] sm:$0xff] %vm573, %v415
      %575 = vst.msk [vmem:[%s204 + $0x8] sm:$0xff] %vm573, %v420
      %576 = vst.msk [vmem:[%s204 + $0x20] sm:$0xff] %vm573, %v425
      %577 = vst.msk [vmem:[%s204 + $0x28] sm:$0xff] %vm573, %v430
      %578 = vst.msk [vmem:[%s204 + $0x40] sm:$0xff] %vm573, %v435
      %579 = vst.msk [vmem:[%s204 + $0x48] sm:$0xff] %vm573, %v440
      %580 = vst.msk [vmem:[%s204 + $0x60] sm:$0xff] %vm573, %v445
      %581 = vst.msk [vmem:[%s204 + $0x68] sm:$0xff] %vm573, %v450
      %582 = vst.msk [vmem:[%s204 + $0x80] sm:$0xff] %vm573, %v455
      %583 = vst.msk [vmem:[%s204 + $0x88] sm:$0xff] %vm573, %v460
      %584 = vst.msk [vmem:[%s204 + $0xa0] sm:$0xff] %vm573, %v465
      %585 = vst.msk [vmem:[%s204 + $0xa8] sm:$0xff] %vm573, %v470
      %586 = vst.msk [vmem:[%s204 + $0xc0] sm:$0xff] %vm573, %v475
      %587 = vst.msk [vmem:[%s204 + $0xc8] sm:$0xff] %vm573, %v480
      %588 = vst.msk [vmem:[%s204 + $0xe0] sm:$0xff] %vm573, %v485
      %589 = vst.msk [vmem:[%s204 + $0xe8] sm:$0xff] %vm573, %v490
      %590 = vst.msk [vmem:[%s204 + $0x100] sm:$0xff] %vm573, %v495
      %591 = vst.msk [vmem:[%s204 + $0x108] sm:$0xff] %vm573, %v500
      %592 = vst.msk [vmem:[%s204 + $0x120] sm:$0xff] %vm573, %v505
      %593 = vst.msk [vmem:[%s204 + $0x128] sm:$0xff] %vm573, %v510
      %594 = vst.msk [vmem:[%s204 + $0x140] sm:$0xff] %vm573, %v515
      %595 = vst.msk [vmem:[%s204 + $0x148] sm:$0xff] %vm573, %v520
      %596 = vst.msk [vmem:[%s204 + $0x160] sm:$0xff] %vm573, %v525
      %597 = vst.msk [vmem:[%s204 + $0x168] sm:$0xff] %vm573, %v530
      %598 = vst.msk [vmem:[%s204 + $0x180] sm:$0xff] %vm573, %v535
      %599 = vst.msk [vmem:[%s204 + $0x188] sm:$0xff] %vm573, %v540
      %600 = vst.msk [vmem:[%s204 + $0x1a0] sm:$0xff] %vm573, %v545
      %601 = vst.msk [vmem:[%s204 + $0x1a8] sm:$0xff] %vm573, %v550
      %602 = vst.msk [vmem:[%s204 + $0x1c0] sm:$0xff] %vm573, %v555
      %603 = vst.msk [vmem:[%s204 + $0x1c8] sm:$0xff] %vm573, %v560
      %604 = vst.msk [vmem:[%s204 + $0x1e0] sm:$0xff] %vm573, %v565
      %605 = vst.msk [vmem:[%s204 + $0x1e8] sm:$0xff] %vm573, %v570
      %s606 = scalar_lea.vmem %s204, 16
      %607 = vst.msk [vmem:[%s606] sm:$0xff] %vm573, %v415
      %608 = vst.msk [vmem:[%s606 + $0x8] sm:$0xff] %vm573, %v420
      %609 = vst.msk [vmem:[%s606 + $0x20] sm:$0xff] %vm573, %v425
      %610 = vst.msk [vmem:[%s606 + $0x28] sm:$0xff] %vm573, %v430
      %611 = vst.msk [vmem:[%s606 + $0x40] sm:$0xff] %vm573, %v435
      %612 = vst.msk [vmem:[%s606 + $0x48] sm:$0xff] %vm573, %v440
      %613 = vst.msk [vmem:[%s606 + $0x60] sm:$0xff] %vm573, %v445
      %614 = vst.msk [vmem:[%s606 + $0x68] sm:$0xff] %vm573, %v450
      %615 = vst.msk [vmem:[%s606 + $0x80] sm:$0xff] %vm573, %v455
      %616 = vst.msk [vmem:[%s606 + $0x88] sm:$0xff] %vm573, %v460
      %617 = vst.msk [vmem:[%s606 + $0xa0] sm:$0xff] %vm573, %v465
      %618 = vst.msk [vmem:[%s606 + $0xa8] sm:$0xff] %vm573, %v470
      %619 = vst.msk [vmem:[%s606 + $0xc0] sm:$0xff] %vm573, %v475
      %620 = vst.msk [vmem:[%s606 + $0xc8] sm:$0xff] %vm573, %v480
      %621 = vst.msk [vmem:[%s606 + $0xe0] sm:$0xff] %vm573, %v485
      %622 = vst.msk [vmem:[%s606 + $0xe8] sm:$0xff] %vm573, %v490
      %623 = vst.msk [vmem:[%s606 + $0x100] sm:$0xff] %vm573, %v495
      %624 = vst.msk [vmem:[%s606 + $0x108] sm:$0xff] %vm573, %v500
      %625 = vst.msk [vmem:[%s606 + $0x120] sm:$0xff] %vm573, %v505
      %626 = vst.msk [vmem:[%s606 + $0x128] sm:$0xff] %vm573, %v510
      %627 = vst.msk [vmem:[%s606 + $0x140] sm:$0xff] %vm573, %v515
      %628 = vst.msk [vmem:[%s606 + $0x148] sm:$0xff] %vm573, %v520
      %629 = vst.msk [vmem:[%s606 + $0x160] sm:$0xff] %vm573, %v525
      %630 = vst.msk [vmem:[%s606 + $0x168] sm:$0xff] %vm573, %v530
      %631 = vst.msk [vmem:[%s606 + $0x180] sm:$0xff] %vm573, %v535
      %632 = vst.msk [vmem:[%s606 + $0x188] sm:$0xff] %vm573, %v540
      %633 = vst.msk [vmem:[%s606 + $0x1a0] sm:$0xff] %vm573, %v545
      %634 = vst.msk [vmem:[%s606 + $0x1a8] sm:$0xff] %vm573, %v550
      %635 = vst.msk [vmem:[%s606 + $0x1c0] sm:$0xff] %vm573, %v555
      %636 = vst.msk [vmem:[%s606 + $0x1c8] sm:$0xff] %vm573, %v560
      %637 = vst.msk [vmem:[%s606 + $0x1e0] sm:$0xff] %vm573, %v565
      %638 = vst.msk [vmem:[%s606 + $0x1e8] sm:$0xff] %vm573, %v570
      %s639 = sadd.s32 %s18, %s19
      %s640 = smul.u32 16, %s639
      %p641 = scmp.lt.s32.totalorder %s640, 31
      %s642 = scalar_select %p641, %s640, 31
      %s643 = smul.addr %s642, 4
      %s644 = smul.addr %s643, 8
      %s645 = scalar_lea.vmem %s3, %s644
      // Predicated region
      $region33: #{fpn_decoder_block_nhwc.1} parent=31 // pred_check
        %p646 = pneg %p116
      $region34: #{fpn_decoder_block_nhwc.1} parent=31 // pred_check_branch
        %648 = sbr.rel (%p646) target = $region36
      $region35: #{fpn_decoder_block_nhwc.1} parent=31 // pred_region
        %s649 = sadd.s32 %s18, %s19
        %s650 = smul.u32 16, %s649
      $region36: #{fpn_decoder_block_nhwc.1} parent=31 // pred_fallthru
        _
    $region32: #{fpn_decoder_block_nhwc.1} parent=5 // pred_fallthru
      _
    %p651 = scmp.le.s32.totalorder 2, %s9
    // Predicated region
    $region37: #{fpn_decoder_block_nhwc.1} parent=5 // pred_check
      %p652 = pneg %p651
    $region38: #{fpn_decoder_block_nhwc.1} parent=5 // pred_check_branch
      %654 = sbr.rel (%p652) target = $region40
    $region39: #{fpn_decoder_block_nhwc.1} parent=5 // pred_region
      %s655 = ssub.s32 %s9, 2
      // Predicated region
      $region41: #{fpn_decoder_block_nhwc.1} parent=39 // pred_check
        %p656 = pneg %p122
      $region42: #{fpn_decoder_block_nhwc.1} parent=39 // pred_check_branch
        %658 = sbr.rel (%p656) target = $region44
      $region43: #{fpn_decoder_block_nhwc.1} parent=39 // pred_region
        %s659 = sadd.s32 %s20, %s21
        %s660 = smul.u32 16, %s659
        %p661 = scmp.lt.s32.totalorder %s660, 31
        %s662 = scalar_select %p661, %s660, 31
        %s663 = smul.addr %s662, 4
        %s664 = smul.addr %s663, 8
        %s665 = scalar_lea.vmem %s3, %s664
      $region44: #{fpn_decoder_block_nhwc.1} parent=39 // pred_fallthru
        _
    $region40: #{fpn_decoder_block_nhwc.1} parent=5 // pred_fallthru
      _
  $region6: #{fpn_decoder_block_nhwc.1} parent=0 // loop_footer
    %s13 = sadd.s32 1, %s9
  $region7: #{fpn_decoder_block_nhwc.1} parent=0 // loop_footer_branch
    %8 = sbr.rel target = $region3
  $region8: #{fpn_decoder_block_nhwc.1} parent=0 // loop_exit
    _

</llo_original>
